<compile_context>
chip_gen: v6e
topology: v6e:2x2x1
jax: 0.10.0
libtpu: 0.0.40
codegen_flags: <defaults>
</compile_context>

<pallas_src>
import functools

import jax
import jax.numpy as jnp
from jax import lax
from jax.experimental import pallas as pl
from jax.experimental.pallas import tpu as pltpu


def _round_up(x, m):
    return (x + m - 1) // m * m


def _embed_gather_kernel(labels_ref, table_ref, out_ref, *, tb, unroll):
    """labels_ref: SMEM (Bp,) int32 (scalar prefetch); table_ref: VMEM (V, D)
    resident table; out_ref: VMEM (TB, D) output block for this grid step."""
    i = pl.program_id(0)

    def body(j, carry):
        lbl = labels_ref[i * tb + j]
        out_ref[pl.ds(j, 1), :] = table_ref[pl.ds(lbl, 1), :]
        return carry

    lax.fori_loop(0, tb, body, 0, unroll=unroll)


def _token_drop(labels, num_classes, dropout_prob, drop_key, force_drop_ids):
    """Plain-JAX port of LabelEmbedder.token_drop."""
    B = labels.shape[0]
    if force_drop_ids is None:
        drop_ids = jax.random.uniform(drop_key, (B,)) < dropout_prob
    else:
        drop_ids = force_drop_ids == 1
    return jnp.where(drop_ids, num_classes, labels)


def label_embedder_forward(labels, embedding_table, *, num_classes, dropout_prob,
                           train, drop_key=None, force_drop_ids=None,
                           tile_b=None):
    """labels: (B,) int; embedding_table: (V, D) with V = num_classes + (dropout_prob>0).

    Returns (B, D) embeddings, matching LabelEmbedder.forward.
    """
    labels = labels.astype(jnp.int32)
    B = labels.shape[0]
    V, D = embedding_table.shape
    if D % 128 != 0:
        raise ValueError(f"hidden_size D={D} must be a multiple of 128 "
                         "(lane-dense output blocks).")

    use_dropout = dropout_prob > 0
    if train and use_dropout and drop_key is None and force_drop_ids is None:
        raise ValueError("drop_key is required when train=True and dropout_prob>0")
    if force_drop_ids is not None and not use_dropout:
        raise ValueError("force_drop_ids requires dropout_prob>0 (needs CFG null row)")
    if (train and use_dropout) or (force_drop_ids is not None):
        labels = _token_drop(labels, num_classes, dropout_prob, drop_key,
                             force_drop_ids)
    # Match jnp.take's clamp-under-jit semantics and guarantee in-bounds gather.
    labels = jnp.clip(labels, 0, V - 1)

    dtype = embedding_table.dtype
    itemsize = jnp.dtype(dtype).itemsize
    sublane = 8 if itemsize == 4 else (16 if itemsize == 2 else 32)

    if tile_b is None:
        tile_b = min(256, _round_up(B, sublane))
    tile_b = max(sublane, _round_up(tile_b, sublane))
    Bp = _round_up(B, tile_b)
    if Bp != B:
        labels = jnp.pad(labels, (0, Bp - B))  # padded rows gather row 0, sliced off
    grid = (Bp // tile_b,)

    # VMEM budget: resident table (double-buffered by the pipeline) + output blocks.
    table_bytes = V * D * itemsize
    out_block_bytes = tile_b * D * itemsize
    vmem_needed = 2 * table_bytes + 2 * out_block_bytes + (1 << 20)
    vmem_limit = min(128 << 20, max(32 << 20, vmem_needed))
    if table_bytes > (48 << 20):
        # TODO(synk): streaming / data-dependent-row gather fallback for huge tables.
        raise NotImplementedError("embedding table too large for VMEM-resident gather")

    kernel = functools.partial(_embed_gather_kernel, tb=tile_b,
                               unroll=(tile_b <= 32))

    grid_spec = pltpu.PrefetchScalarGridSpec(
        num_scalar_prefetch=1,  # labels -> SMEM, available to index_maps + body
        grid=grid,
        in_specs=[
            # Full table, constant block index -> DMA'd once, VMEM-resident.
            pl.BlockSpec((V, D), lambda i, labels_ref: (0, 0)),
        ],
        out_specs=pl.BlockSpec((tile_b, D), lambda i, labels_ref: (i, 0)),
    )

    out = pl.pallas_call(
        kernel,
        out_shape=jax.ShapeDtypeStruct((Bp, D), dtype),
        grid_spec=grid_spec,
        compiler_params=pltpu.CompilerParams(
            dimension_semantics=("parallel",),
            vmem_limit_bytes=vmem_limit),
    )(labels, embedding_table)
    return out[:B]


def reference_forward(labels, embedding_table, *, num_classes, dropout_prob,
                      train, drop_key=None, force_drop_ids=None):
    """Pure-JAX reference matching the PyTorch forward."""
    labels = labels.astype(jnp.int32)
    use_dropout = dropout_prob > 0
    if (train and use_dropout) or (force_drop_ids is not None):
        labels = _token_drop(labels, num_classes, dropout_prob, drop_key,
                             force_drop_ids)
    return jnp.take(embedding_table, labels, axis=0)


if __name__ == "__main__":
    key = jax.random.PRNGKey(0)
    kt, kl, kd = jax.random.split(key, 3)

    num_classes = 10
    dropout_prob = 0.1
    hidden_size = 128            # lane-dense (multiple of 128)
    B = 8
    V = num_classes + (1 if dropout_prob > 0 else 0)   # extra CFG "null" embedding

    embedding_table = jax.random.normal(kt, (V, hidden_size), jnp.float32)
    labels = jax.random.randint(kl, (B,), 0, num_classes, jnp.int32)

    # Case 1: eval mode (no dropout path).
    out_eval = label_embedder_forward(
        labels, embedding_table, num_classes=num_classes,
        dropout_prob=dropout_prob, train=False)
    jax.block_until_ready(out_eval)
    ref_eval = reference_forward(
        labels, embedding_table, num_classes=num_classes,
        dropout_prob=dropout_prob, train=False)
    assert jnp.array_equal(out_eval, ref_eval), "eval-mode mismatch vs reference"

    # Case 2: training mode with stochastic token drop (shared key -> same drops).
    out_train = label_embedder_forward(
        labels, embedding_table, num_classes=num_classes,
        dropout_prob=dropout_prob, train=True, drop_key=kd)
    jax.block_until_ready(out_train)
    ref_train = reference_forward(
        labels, embedding_table, num_classes=num_classes,
        dropout_prob=dropout_prob, train=True, drop_key=kd)
    assert jnp.array_equal(out_train, ref_train), "train-mode mismatch vs reference"

    # Case 3: forced drops (classifier-free guidance): dropped rows must hit the
    # extra `num_classes` embedding row.
    force_drop_ids = jnp.array([1, 0, 1, 0, 1, 0, 0, 1], jnp.int32)
    out_forced = label_embedder_forward(
        labels, embedding_table, num_classes=num_classes,
        dropout_prob=dropout_prob, train=False, force_drop_ids=force_drop_ids)
    jax.block_until_ready(out_forced)
    ref_forced = reference_forward(
        labels, embedding_table, num_classes=num_classes,
        dropout_prob=dropout_prob, train=False, force_drop_ids=force_drop_ids)
    assert jnp.array_equal(out_forced, ref_forced), "forced-drop mismatch vs reference"
    assert jnp.array_equal(out_forced[0], embedding_table[num_classes]), \
        "forced-dropped label must map to the CFG null embedding"

    # Case 4: batch not a multiple of the sublane tile (padding path).
    labels_odd = labels[:5]
    out_odd = label_embedder_forward(
        labels_odd, embedding_table, num_classes=num_classes,
        dropout_prob=dropout_prob, train=False)
    jax.block_until_ready(out_odd)
    ref_odd = reference_forward(
        labels_odd, embedding_table, num_classes=num_classes,
        dropout_prob=dropout_prob, train=False)
    assert jnp.array_equal(out_odd, ref_odd), "ragged-batch mismatch vs reference"

    print("KERNEL_OK")
</pallas_src>

<mosaic_0001>
module attributes {stable_mosaic.version = 11 : i64} {
  func.func @_embed_gather_kernel(%arg0: i32, %arg1: memref<8xi32, #tpu.memory_space<smem>>, %arg2: memref<11x128xf32, #tpu.memory_space<vmem>>, %arg3: memref<8x128xf32, #tpu.memory_space<vmem>>) attributes {dimension_semantics = [#tpu.dimension_semantics<parallel>], iteration_bounds = array<i64: 1>, scalar_prefetch = 1 : i64, scratch_operands = 0 : i64, tpu.core_type = #tpu.core_type<tc>, window_params = [{pipeline_mode = #tpu.pipeline_mode<synchronous>, transform_indices = @transform_0, window_bounds = array<i64: 11, 128>}, {transform_indices = @transform_1, window_bounds = array<i64: 8, 128>}]} {
    %c0_i32 = arith.constant 0 : i32
    %c8_i32 = arith.constant 8 : i32
    %0 = arith.muli %arg0, %c8_i32 : i32
    %1 = arith.addi %0, %c0_i32 : i32
    %2 = arith.index_cast %1 : i32 to index
    %3 = memref.load %arg1[%2] : memref<8xi32, #tpu.memory_space<smem>>
    %4 = arith.index_cast %3 : i32 to index
    %c0 = arith.constant 0 : index
    %5 = vector.load %arg2[%4, %c0] : memref<11x128xf32, #tpu.memory_space<vmem>>, vector<1x128xf32>
    %6 = arith.index_cast %c0_i32 : i32 to index
    %c0_0 = arith.constant 0 : index
    %7 = vector.load %arg3[%6, %c0_0] : memref<8x128xf32, #tpu.memory_space<vmem>>, vector<1x128xf32>
    tpu.vector_store %arg3[%6, %c0_0], %5 {strides = array<i32>} : memref<8x128xf32, #tpu.memory_space<vmem>>, vector<1x128xf32>,
    %c1_i32 = arith.constant 1 : i32
    %c8_i32_1 = arith.constant 8 : i32
    %8 = arith.muli %arg0, %c8_i32_1 : i32
    %9 = arith.addi %8, %c1_i32 : i32
    %10 = arith.index_cast %9 : i32 to index
    %11 = memref.load %arg1[%10] : memref<8xi32, #tpu.memory_space<smem>>
    %12 = arith.index_cast %11 : i32 to index
    %c0_2 = arith.constant 0 : index
    %13 = vector.load %arg2[%12, %c0_2] : memref<11x128xf32, #tpu.memory_space<vmem>>, vector<1x128xf32>
    %14 = arith.index_cast %c1_i32 : i32 to index
    %c0_3 = arith.constant 0 : index
    %15 = vector.load %arg3[%14, %c0_3] : memref<8x128xf32, #tpu.memory_space<vmem>>, vector<1x128xf32>
    tpu.vector_store %arg3[%14, %c0_3], %13 {strides = array<i32>} : memref<8x128xf32, #tpu.memory_space<vmem>>, vector<1x128xf32>,
    %c2_i32 = arith.constant 2 : i32
    %c8_i32_4 = arith.constant 8 : i32
    %16 = arith.muli %arg0, %c8_i32_4 : i32
    %17 = arith.addi %16, %c2_i32 : i32
    %18 = arith.index_cast %17 : i32 to index
    %19 = memref.load %arg1[%18] : memref<8xi32, #tpu.memory_space<smem>>
    %20 = arith.index_cast %19 : i32 to index
    %c0_5 = arith.constant 0 : index
    %21 = vector.load %arg2[%20, %c0_5] : memref<11x128xf32, #tpu.memory_space<vmem>>, vector<1x128xf32>
    %22 = arith.index_cast %c2_i32 : i32 to index
    %c0_6 = arith.constant 0 : index
    %23 = vector.load %arg3[%22, %c0_6] : memref<8x128xf32, #tpu.memory_space<vmem>>, vector<1x128xf32>
    tpu.vector_store %arg3[%22, %c0_6], %21 {strides = array<i32>} : memref<8x128xf32, #tpu.memory_space<vmem>>, vector<1x128xf32>,
    %c3_i32 = arith.constant 3 : i32
    %c8_i32_7 = arith.constant 8 : i32
    %24 = arith.muli %arg0, %c8_i32_7 : i32
    %25 = arith.addi %24, %c3_i32 : i32
    %26 = arith.index_cast %25 : i32 to index
    %27 = memref.load %arg1[%26] : memref<8xi32, #tpu.memory_space<smem>>
    %28 = arith.index_cast %27 : i32 to index
    %c0_8 = arith.constant 0 : index
    %29 = vector.load %arg2[%28, %c0_8] : memref<11x128xf32, #tpu.memory_space<vmem>>, vector<1x128xf32>
    %30 = arith.index_cast %c3_i32 : i32 to index
    %c0_9 = arith.constant 0 : index
    %31 = vector.load %arg3[%30, %c0_9] : memref<8x128xf32, #tpu.memory_space<vmem>>, vector<1x128xf32>
    tpu.vector_store %arg3[%30, %c0_9], %29 {strides = array<i32>} : memref<8x128xf32, #tpu.memory_space<vmem>>, vector<1x128xf32>,
    %c4_i32 = arith.constant 4 : i32
    %c8_i32_10 = arith.constant 8 : i32
    %32 = arith.muli %arg0, %c8_i32_10 : i32
    %33 = arith.addi %32, %c4_i32 : i32
    %34 = arith.index_cast %33 : i32 to index
    %35 = memref.load %arg1[%34] : memref<8xi32, #tpu.memory_space<smem>>
    %36 = arith.index_cast %35 : i32 to index
    %c0_11 = arith.constant 0 : index
    %37 = vector.load %arg2[%36, %c0_11] : memref<11x128xf32, #tpu.memory_space<vmem>>, vector<1x128xf32>
    %38 = arith.index_cast %c4_i32 : i32 to index
    %c0_12 = arith.constant 0 : index
    %39 = vector.load %arg3[%38, %c0_12] : memref<8x128xf32, #tpu.memory_space<vmem>>, vector<1x128xf32>
    tpu.vector_store %arg3[%38, %c0_12], %37 {strides = array<i32>} : memref<8x128xf32, #tpu.memory_space<vmem>>, vector<1x128xf32>,
    %c5_i32 = arith.constant 5 : i32
    %c8_i32_13 = arith.constant 8 : i32
    %40 = arith.muli %arg0, %c8_i32_13 : i32
    %41 = arith.addi %40, %c5_i32 : i32
    %42 = arith.index_cast %41 : i32 to index
    %43 = memref.load %arg1[%42] : memref<8xi32, #tpu.memory_space<smem>>
    %44 = arith.index_cast %43 : i32 to index
    %c0_14 = arith.constant 0 : index
    %45 = vector.load %arg2[%44, %c0_14] : memref<11x128xf32, #tpu.memory_space<vmem>>, vector<1x128xf32>
    %46 = arith.index_cast %c5_i32 : i32 to index
    %c0_15 = arith.constant 0 : index
    %47 = vector.load %arg3[%46, %c0_15] : memref<8x128xf32, #tpu.memory_space<vmem>>, vector<1x128xf32>
    tpu.vector_store %arg3[%46, %c0_15], %45 {strides = array<i32>} : memref<8x128xf32, #tpu.memory_space<vmem>>, vector<1x128xf32>,
    %c6_i32 = arith.constant 6 : i32
    %c8_i32_16 = arith.constant 8 : i32
    %48 = arith.muli %arg0, %c8_i32_16 : i32
    %49 = arith.addi %48, %c6_i32 : i32
    %50 = arith.index_cast %49 : i32 to index
    %51 = memref.load %arg1[%50] : memref<8xi32, #tpu.memory_space<smem>>
    %52 = arith.index_cast %51 : i32 to index
    %c0_17 = arith.constant 0 : index
    %53 = vector.load %arg2[%52, %c0_17] : memref<11x128xf32, #tpu.memory_space<vmem>>, vector<1x128xf32>
    %54 = arith.index_cast %c6_i32 : i32 to index
    %c0_18 = arith.constant 0 : index
    %55 = vector.load %arg3[%54, %c0_18] : memref<8x128xf32, #tpu.memory_space<vmem>>, vector<1x128xf32>
    tpu.vector_store %arg3[%54, %c0_18], %53 {strides = array<i32>} : memref<8x128xf32, #tpu.memory_space<vmem>>, vector<1x128xf32>,
    %c7_i32 = arith.constant 7 : i32
    %c8_i32_19 = arith.constant 8 : i32
    %56 = arith.muli %arg0, %c8_i32_19 : i32
    %57 = arith.addi %56, %c7_i32 : i32
    %58 = arith.index_cast %57 : i32 to index
    %59 = memref.load %arg1[%58] : memref<8xi32, #tpu.memory_space<smem>>
    %60 = arith.index_cast %59 : i32 to index
    %c0_20 = arith.constant 0 : index
    %61 = vector.load %arg2[%60, %c0_20] : memref<11x128xf32, #tpu.memory_space<vmem>>, vector<1x128xf32>
    %62 = arith.index_cast %c7_i32 : i32 to index
    %c0_21 = arith.constant 0 : index
    %63 = vector.load %arg3[%62, %c0_21] : memref<8x128xf32, #tpu.memory_space<vmem>>, vector<1x128xf32>
    tpu.vector_store %arg3[%62, %c0_21], %61 {strides = array<i32>} : memref<8x128xf32, #tpu.memory_space<vmem>>, vector<1x128xf32>,
    %c8_i32_22 = arith.constant 8 : i32
    return
  }
  func.func @transform_0(%arg0: i32, %arg1: memref<8xi32, #tpu.memory_space<smem>>) -> (i32, i32) {
    %c0_i32 = arith.constant 0 : i32
    %c0_i32_0 = arith.constant 0 : i32
    %c0_i32_1 = arith.constant 0 : i32
    return %c0_i32, %c0_i32_0 : i32, i32
  }
  func.func @transform_1(%arg0: i32, %arg1: memref<8xi32, #tpu.memory_space<smem>>) -> (i32, i32) {
    %c0_i32 = arith.constant 0 : i32
    %c0_i32_0 = arith.constant 0 : i32
    return %arg0, %c0_i32 : i32, i32
  }
}

</mosaic_0001>

<llo_original>
// kernel: tpu_custom_call.1
$region0: #{tpu_custom_call.1}
  #allocation0 [shape = 'u32[]', space=smem, size = 0x4, offset = 0x4, fixed_abs, tag = 'smem constant byte address 0x4 - core index']
  #allocation1 [shape = 'u32[144,128]{1,0:T(1,128)}', space=vmem, size = 0x12000, scoped, tag = 'internal scratch']
  #allocation2 [shape = 's32[1]{0}', space=sflag, size = 0x4, scoped, tag = 'scoped memory for tpu_custom_call.1']
  #allocation3 [shape = 'u8[512]{0}', space=smem, size = 0x200, scoped, tag = 'prefetched SMEM operand 0']
  %s0 = inlined_call_operand.hbm [shape: s32[8], index: 0, kind: input, shape index: {}]
  %s1 = inlined_call_operand.hbm [shape: f32[11,128], index: 1, kind: input, shape index: {}]
  %s2 = inlined_call_operand.hbm [shape: f32[8,128], index: 2, kind: output, shape index: {}]
  %s3 = sld [smem:[#allocation0]]
  $region18: #{tpu_custom_call.1} parent=0
    _
  %s5 = ssub.s32 1, %s3
  %s6 = scalar_select 0, %s5, %s3
  %8 = dma.hbm_to_smem %s0, 16, [#allocation3], [#allocation2]
  %9 = dma.done [#allocation2], 16
  %10 = sfence
  $region1: #{tpu_custom_call.1} parent=0
    #allocation4 [shape = 'u8[8192]{0}', space=vmem, size = 0x2000, scoped, tag = 'input window, operand 1, single buffered']
    #allocation5 [shape = 's32[1]{0}', space=sflag, size = 0x4, scoped, tag = 'scoped memory for tpu_custom_call.1']
    #allocation6 [shape = 's32[1]{0}', space=sflag, size = 0x4, scoped, tag = 'scoped memory for tpu_custom_call.1']
    #allocation7 [shape = 'u8[4096]{0}', space=vmem, size = 0x1000, scoped, tag = 'output window, operand 0, single buffered']
    %11 = vsyncpa [#allocation5], 0
    %12 = vsyncpa [#allocation6], 0
    // Predicated region
    $region2: #{tpu_custom_call.1} parent=1 // pred_check
      _
    $region3: #{tpu_custom_call.1} parent=1 // pred_check_branch
      %14 = sbr.rel (0) target = $region5
    $region4: #{tpu_custom_call.1} parent=1 // pred_region
      %s16 = ssub.s32 256, 256
      %17 = vsyncadd [#allocation5], %s16
      %s18 = sshll.u32 [#allocation4], 4
      %s19 = int_to_ptr.vmem [resolvable:$true] %s18
      %24 = dma.hbm_to_vmem [thread:$0]  %s1, 256, %s19, [#allocation5], 128, 128, 8
    $region5: #{tpu_custom_call.1} parent=1 // pred_fallthru
      _
    // Predicated region
    $region6: #{tpu_custom_call.1} parent=1 // pred_check
      _
    $region7: #{tpu_custom_call.1} parent=1 // pred_check_branch
      %26 = sbr.rel (0) target = $region9
    $region8: #{tpu_custom_call.1} parent=1 // pred_region
      %27 = dma.done [#allocation5], 256
    $region9: #{tpu_custom_call.1} parent=1 // pred_fallthru
      _
    %s28 = smul.u32 0, 8
    %s29 = sld [smem:[#allocation3 + %s28]]
    %s30 = scalar_lea.vmem [#allocation4], %s29
    %v31 = vld [vmem:[%s30] sm:$0x1]
    %32 = vst [vmem:[#allocation7] sm:$0x1] %v31
    %s33 = sadd.s32 %s28, 1
    %s34 = sld [smem:[#allocation3 + %s33]]
    %s35 = scalar_lea.vmem [#allocation4], %s34
    %v36 = vld [vmem:[%s35] sm:$0x1]
    %37 = vst [vmem:[#allocation7 + $0x1] sm:$0x1] %v36
    %s38 = sadd.s32 %s28, 2
    %s39 = sld [smem:[#allocation3 + %s38]]
    %s40 = scalar_lea.vmem [#allocation4], %s39
    %v41 = vld [vmem:[%s40] sm:$0x1]
    %42 = vst [vmem:[#allocation7 + $0x2] sm:$0x1] %v41
    %s43 = sadd.s32 %s28, 3
    %s44 = sld [smem:[#allocation3 + %s43]]
    %s45 = scalar_lea.vmem [#allocation4], %s44
    %v46 = vld [vmem:[%s45] sm:$0x1]
    %47 = vst [vmem:[#allocation7 + $0x3] sm:$0x1] %v46
    %s48 = sadd.s32 %s28, 4
    %s49 = sld [smem:[#allocation3 + %s48]]
    %s50 = scalar_lea.vmem [#allocation4], %s49
    %v51 = vld [vmem:[%s50] sm:$0x1]
    %52 = vst [vmem:[#allocation7 + $0x4] sm:$0x1] %v51
    %s53 = sadd.s32 %s28, 5
    %s54 = sld [smem:[#allocation3 + %s53]]
    %s55 = scalar_lea.vmem [#allocation4], %s54
    %v56 = vld [vmem:[%s55] sm:$0x1]
    %57 = vst [vmem:[#allocation7 + $0x5] sm:$0x1] %v56
    %s58 = sadd.s32 %s28, 6
    %s59 = sld [smem:[#allocation3 + %s58]]
    %s60 = scalar_lea.vmem [#allocation4], %s59
    %v61 = vld [vmem:[%s60] sm:$0x1]
    %62 = vst [vmem:[#allocation7 + $0x6] sm:$0x1] %v61
    %s63 = sadd.s32 %s28, 7
    %s64 = sld [smem:[#allocation3 + %s63]]
    %s65 = scalar_lea.vmem [#allocation4], %s64
    %v66 = vld [vmem:[%s65] sm:$0x1]
    %67 = vst [vmem:[#allocation7 + $0x7] sm:$0x1] %v66
    // Predicated region
    $region10: #{tpu_custom_call.1} parent=1 // pred_check
      _
    $region11: #{tpu_custom_call.1} parent=1 // pred_check_branch
      %69 = sbr.rel (0) target = $region13
    $region12: #{tpu_custom_call.1} parent=1 // pred_region
      %s71 = ssub.s32 128, 128
      %72 = vsyncadd [#allocation6], %s71
      %s74 = sshll.u32 [#allocation7], 4
      %s75 = int_to_ptr.vmem [resolvable:$true] %s74
      %77 = dma.vmem_to_hbm [thread:$0]  %s75, 128, %s2, [#allocation6]
    $region13: #{tpu_custom_call.1} parent=1 // pred_fallthru
      _
    // Predicated region
    $region14: #{tpu_custom_call.1} parent=1 // pred_check
      _
    $region15: #{tpu_custom_call.1} parent=1 // pred_check_branch
      %79 = sbr.rel (0) target = $region17
    $region16: #{tpu_custom_call.1} parent=1 // pred_region
      %80 = dma.done [#allocation6], 128
    $region17: #{tpu_custom_call.1} parent=1 // pred_fallthru
      _
    %81 = vsyncpa [#allocation5], 1
    %82 = vsyncpa [#allocation6], 1

</llo_original>
